<compile_context>
chip_gen: v7x
topology: tpu7x:2x2x1
jax: 0.10.0
libtpu: 0.0.40
codegen_flags: <defaults>
</compile_context>

<pallas_src>
import math

import jax
import jax.numpy as jnp
from jax.experimental import pallas as pl
from jax.experimental.pallas import tpu as pltpu


def _layer_scale_kernel(gamma_ref, x_ref, o_ref):
    # (TILE_R, TILE_L) * (1, TILE_L) broadcasts directly (no per-iteration broadcast_in_dim).
    # The cast is a no-op when x and gamma share a dtype; otherwise it realizes PyTorch-style
    # promotion (e.g. bf16 x with f32 gamma -> f32 output).
    o_ref[...] = (x_ref[...] * gamma_ref[...]).astype(o_ref.dtype)


def layer_scale(
    x: jax.Array,
    gamma: jax.Array,
    *,
    target_block_bytes: int = 8 * 1024 * 1024,
    donate_x: bool = False,
) -> jax.Array:
    """Computes x * gamma with gamma broadcast along the last axis of x.

    x: (..., D), gamma: (D,). Output dtype follows jnp.result_type(x, gamma)
    (matches PyTorch's `x * gamma` promotion).
    """
    orig_shape = x.shape
    D = orig_shape[-1]
    rows = math.prod(orig_shape[:-1]) if len(orig_shape) > 1 else 1

    out_dtype = jnp.result_type(x.dtype, gamma.dtype)
    gamma = gamma.astype(out_dtype)

    x2d = x.reshape(rows, D)

    # --- Lane-density folding: make the lane dim a multiple of 128 -----------------------
    k = 128 // math.gcd(D, 128)          # smallest k with (k * D) % 128 == 0
    pad_rows = 0
    if k > 1:
        pad_rows = (-rows) % k
        if pad_rows:
            # A few padded rows of wasted bandwidth beat masked vst.msk partial stores.
            x2d = jnp.concatenate(
                [x2d, jnp.zeros((pad_rows, D), dtype=x.dtype)], axis=0)
        R = (rows + pad_rows) // k
        L = k * D
        gamma_row = jnp.tile(gamma, k)   # folded row = [row_i | row_{i+1} | ...]
        x2d = x2d.reshape(R, L)
    else:                                # D already a multiple of 128
        R, L = rows, D
        gamma_row = gamma
    gamma2d = gamma_row.reshape(1, L)    # L % 128 == 0 in all paths

    # --- Tile sizing ----------------------------------------------------------------------
    in_bytes = jnp.dtype(x.dtype).itemsize
    out_bytes = jnp.dtype(out_dtype).itemsize
    # Sublane packing factor of the narrowest dtype involved (8 f32 / 16 bf16 / 32 i8).
    pack = max(8, 32 // min(in_bytes, out_bytes))

    # Lane tiling: only split L when even a minimal (pack-row) slab exceeds the block budget.
    if pack * L * in_bytes <= target_block_bytes:
        tile_l = L
    else:
        tile_l = max(128, (target_block_bytes // (pack * in_bytes)) // 128 * 128)
        tile_l = min(tile_l, L)
        while L % tile_l != 0:           # L is a multiple of 128, so this terminates at 128
            tile_l -= 128
    n_l = -(-L // tile_l)

    # Row tiling: ~target_block_bytes per x block, rounded to the packing factor.
    tile_r = max(pack, (target_block_bytes // max(1, tile_l * in_bytes)) // pack * pack)
    if R <= tile_r:
        tile_r = R                       # full row extent -> legal block even if < pack
    n_r = -(-R // tile_r)

    # Guarantee enough grid steps for pipelining / both v7x TensorCores on mid-sized inputs.
    MIN_STEPS = 4                        # 2 TCs x double buffer
    total_bytes = R * L * in_bytes
    if n_r * n_l < MIN_STEPS and total_bytes > (2 << 20):
        steps_needed = -(-MIN_STEPS // n_l)
        cand = (R // steps_needed) // pack * pack
        if cand >= pack:
            tile_r = cand
            n_r = -(-R // tile_r)

    # Prefer a row tile that divides R evenly (avoids a ragged tail block).
    if tile_r < R and R % tile_r != 0:
        for cand in range(tile_r, max(pack, tile_r // 2) - 1, -pack):
            if R % cand == 0:
                tile_r = cand
                break
        n_r = -(-R // tile_r)

    grid = (n_r, n_l)

    # --- VMEM limit: actual double-buffered footprint + margin (don't hardcode 64 MiB) ----
    block_in = tile_r * tile_l * in_bytes
    block_out = tile_r * tile_l * out_bytes
    gamma_block = 8 * tile_l * out_bytes            # padded to 8 sublanes
    vmem_limit = 2 * (block_in + block_out + gamma_block) + (8 << 20)   # + compiler margin
    vmem_limit = min(vmem_limit, 96 << 20)

    alias_ok = donate_x and pad_rows == 0 and out_dtype == jnp.dtype(x.dtype)

    out2d = pl.pallas_call(
        _layer_scale_kernel,
        out_shape=jax.ShapeDtypeStruct((R, L), out_dtype),
        grid_spec=pltpu.PrefetchScalarGridSpec(
            num_scalar_prefetch=0,
            grid=grid,
            in_specs=[
                # gamma: same block index along rows -> stays VMEM-resident across row steps.
                pl.BlockSpec((1, tile_l), lambda i, j: (0, j)),
                # x: one lane-dense (tile_r, tile_l) tile per grid step.
                pl.BlockSpec((tile_r, tile_l), lambda i, j: (i, j)),
            ],
            out_specs=pl.BlockSpec((tile_r, tile_l), lambda i, j: (i, j)),
        ),
        compiler_params=pltpu.CompilerParams(
            dimension_semantics=("parallel", "parallel"),   # shard grid across TCs on v7x
            vmem_limit_bytes=int(vmem_limit),
        ),
        # Optional: reuse x's buffer for the output (caller must not use x afterwards).
        input_output_aliases=({1: 0} if alias_ok else {}),
    )(gamma2d, x2d)

    # --- Un-fold / un-pad back to the original shape ---------------------------------------
    if k > 1:
        out2d = out2d.reshape(R * k, D)
        if pad_rows:
            out2d = out2d[:rows]
    return out2d.reshape(orig_shape)

# TODO(synk): the `inplace=True` (x.mul_) variant has no true in-place equivalent in JAX;
# donate_x=True (buffer aliasing) is the closest analogue.


if __name__ == "__main__":
    key = jax.random.PRNGKey(0)
    B, N, D = 2, 8, 32
    init_values = 1e-05   # matches nn.Parameter(init_values * torch.ones(dim))

    # Case 1: module defaults (f32 x, f32 gamma); rows divide the lane-fold factor.
    x = jax.random.normal(key, (B, N, D), dtype=jnp.float32)
    gamma = init_values * jnp.ones((D,), dtype=jnp.float32)
    out = jax.block_until_ready(layer_scale(x, gamma))
    ref = x * gamma
    assert out.shape == x.shape and out.dtype == ref.dtype
    assert jnp.allclose(out, ref, rtol=1e-6, atol=1e-6)

    # Case 2: bf16 activations with f32 gamma (PyTorch-style promotion to f32).
    xb = x.astype(jnp.bfloat16)
    outb = jax.block_until_ready(layer_scale(xb, gamma))
    refb = xb * gamma
    assert outb.dtype == refb.dtype
    assert jnp.allclose(outb, refb, rtol=1e-6, atol=1e-6)

    # Case 3: row-padding fallback (rows not a multiple of the fold factor, D % 128 != 0).
    x3 = jax.random.normal(jax.random.PRNGKey(1), (3, 5, 48), dtype=jnp.float32)
    gamma3 = init_values * jnp.ones((48,), dtype=jnp.float32)
    out3 = jax.block_until_ready(layer_scale(x3, gamma3))
    ref3 = x3 * gamma3
    assert out3.shape == x3.shape
    assert jnp.allclose(out3, ref3, rtol=1e-6, atol=1e-6)

    print("KERNEL_OK")
</pallas_src>

<mosaic_0001>
module attributes {stable_mosaic.version = 11 : i64} {
  func.func @_layer_scale_kernel(%arg0: i32, %arg1: i32, %arg2: memref<1x128xf32, #tpu.memory_space<vmem>>, %arg3: memref<4x128xf32, #tpu.memory_space<vmem>>, %arg4: memref<4x128xf32, #tpu.memory_space<vmem>>) attributes {dimension_semantics = [#tpu.dimension_semantics<parallel>, #tpu.dimension_semantics<parallel>], iteration_bounds = array<i64: 1, 1>, scalar_prefetch = 0 : i64, scratch_operands = 0 : i64, tpu.core_type = #tpu.core_type<tc>, window_params = [{transform_indices = @transform_0, window_bounds = array<i64: 1, 128>}, {transform_indices = @transform_1, window_bounds = array<i64: 4, 128>}, {transform_indices = @transform_2, window_bounds = array<i64: 4, 128>}]} {
    %c0 = arith.constant 0 : index
    %c0_0 = arith.constant 0 : index
    %0 = vector.load %arg3[%c0, %c0_0] : memref<4x128xf32, #tpu.memory_space<vmem>>, vector<4x128xf32>
    %c0_1 = arith.constant 0 : index
    %c0_2 = arith.constant 0 : index
    %1 = vector.load %arg2[%c0_1, %c0_2] : memref<1x128xf32, #tpu.memory_space<vmem>>, vector<1x128xf32>
    %2 = vector.broadcast %1 : vector<1x128xf32> to vector<4x128xf32>
    %3 = arith.mulf %0, %2 : vector<4x128xf32>
    %c0_3 = arith.constant 0 : index
    %c0_4 = arith.constant 0 : index
    %4 = vector.load %arg4[%c0_3, %c0_4] : memref<4x128xf32, #tpu.memory_space<vmem>>, vector<4x128xf32>
    tpu.vector_store %arg4[%c0_3, %c0_4], %3 {strides = array<i32>} : memref<4x128xf32, #tpu.memory_space<vmem>>, vector<4x128xf32>,
    return
  }
  func.func @transform_0(%arg0: i32, %arg1: i32) -> (i32, i32) {
    %c0_i32 = arith.constant 0 : i32
    %c0_i32_0 = arith.constant 0 : i32
    return %c0_i32, %arg1 : i32, i32
  }
  func.func @transform_1(%arg0: i32, %arg1: i32) -> (i32, i32) {
    %c0_i32 = arith.constant 0 : i32
    return %arg0, %arg1 : i32, i32
  }
  func.func @transform_2(%arg0: i32, %arg1: i32) -> (i32, i32) {
    %c0_i32 = arith.constant 0 : i32
    return %arg0, %arg1 : i32, i32
  }
}

</mosaic_0001>

<llo_original>
// kernel: tpu_custom_call.1
$region0: #{tpu_custom_call.1}
  #allocation0 [shape = 'u32[]', space=smem, size = 0x4, offset = 0x4, fixed_abs, tag = 'smem constant byte address 0x4 - core index']
  #allocation1 [shape = 'u32[144,128]{1,0:T(1,128)}', space=vmem, size = 0x12000, scoped, tag = 'internal scratch']
  %s0 = inlined_call_operand.hbm [shape: f32[1,128], index: 0, kind: input, shape index: {}]
  %s1 = inlined_call_operand.hbm [shape: f32[4,128], index: 1, kind: input, shape index: {}]
  %s2 = inlined_call_operand.hbm [shape: f32[4,128], index: 2, kind: output, shape index: {}]
  %s3 = sld [smem:[#allocation0]]
  $region26: #{tpu_custom_call.1} parent=0
    _
  %s5 = ssub.s32 1, %s3
  %s6 = scalar_select 0, %s5, %s3
  $region1: #{tpu_custom_call.1} parent=0
    #allocation2 [shape = 'u8[512]{0}', space=vmem, size = 0x400, scoped, tag = 'input window, operand 0, single buffered']
    #allocation3 [shape = 's32[1]{0}', space=sflag, size = 0x4, scoped, tag = 'scoped memory for tpu_custom_call.1']
    #allocation4 [shape = 's32[1]{0}', space=sflag, size = 0x4, scoped, tag = 'scoped memory for tpu_custom_call.1']
    #allocation5 [shape = 'u8[2048]{0}', space=vmem, size = 0x800, scoped, tag = 'input window, operand 1, single buffered']
    #allocation6 [shape = 's32[1]{0}', space=sflag, size = 0x4, scoped, tag = 'scoped memory for tpu_custom_call.1']
    #allocation7 [shape = 'u8[2048]{0}', space=vmem, size = 0x800, scoped, tag = 'output window, operand 0, single buffered']
    %7 = vsyncpa [#allocation3], 0
    %8 = vsyncpa [#allocation6], 0
    %9 = vsyncpa [#allocation4], 0
    // Predicated region
    $region2: #{tpu_custom_call.1} parent=1 // pred_check
      _
    $region3: #{tpu_custom_call.1} parent=1 // pred_check_branch
      %11 = sbr.rel (0) target = $region5
    $region4: #{tpu_custom_call.1} parent=1 // pred_region
      %s13 = ssub.s32 16, 16
      %14 = vsyncadd [#allocation3], %s13
      %s16 = sshll.u32 [#allocation2], 4
      %s17 = int_to_ptr.vmem [resolvable:$true] %s16
      %19 = dma.hbm_to_vmem [thread:$0]  %s0, 16, %s17, [#allocation3]
    $region5: #{tpu_custom_call.1} parent=1 // pred_fallthru
      _
    // Predicated region
    $region6: #{tpu_custom_call.1} parent=1 // pred_check
      _
    $region7: #{tpu_custom_call.1} parent=1 // pred_check_branch
      %21 = sbr.rel (0) target = $region9
    $region8: #{tpu_custom_call.1} parent=1 // pred_region
      %s23 = ssub.s32 64, 64
      %24 = vsyncadd [#allocation6], %s23
      %s26 = sshll.u32 [#allocation5], 4
      %s27 = int_to_ptr.vmem [resolvable:$true] %s26
      %29 = dma.hbm_to_vmem [thread:$0]  %s1, 64, %s27, [#allocation6]
    $region9: #{tpu_custom_call.1} parent=1 // pred_fallthru
      _
    // Predicated region
    $region10: #{tpu_custom_call.1} parent=1 // pred_check
      _
    $region11: #{tpu_custom_call.1} parent=1 // pred_check_branch
      %31 = sbr.rel (0) target = $region13
    $region12: #{tpu_custom_call.1} parent=1 // pred_region
      %32 = dma.done [#allocation3], 16
    $region13: #{tpu_custom_call.1} parent=1 // pred_fallthru
      _
    // Predicated region
    $region14: #{tpu_custom_call.1} parent=1 // pred_check
      _
    $region15: #{tpu_custom_call.1} parent=1 // pred_check_branch
      %34 = sbr.rel (0) target = $region17
    $region16: #{tpu_custom_call.1} parent=1 // pred_region
      %35 = dma.done [#allocation6], 64
    $region17: #{tpu_custom_call.1} parent=1 // pred_fallthru
      _
    %v36 = vld [vmem:[#allocation5] sm:$0xf]
    %v37 = vld [vmem:[#allocation2] sm:$0x1]
    %v39 = vlaneseq
    %v40 = vshrl.u32 %v39, 7
    %v41 = vsub.s32 0, %v40
    %v42 = vrot.slane %v37, %v41
    %v44 = vmul.f32 %v36, %v42
    %45 = vst [vmem:[#allocation7] sm:$0xf] %v44
    // Predicated region
    $region18: #{tpu_custom_call.1} parent=1 // pred_check
      _
    $region19: #{tpu_custom_call.1} parent=1 // pred_check_branch
      %47 = sbr.rel (0) target = $region21
    $region20: #{tpu_custom_call.1} parent=1 // pred_region
      %s49 = ssub.s32 64, 64
      %50 = vsyncadd [#allocation4], %s49
      %s52 = sshll.u32 [#allocation7], 4
      %s53 = int_to_ptr.vmem [resolvable:$true] %s52
      %55 = dma.vmem_to_hbm [thread:$0]  %s53, 64, %s2, [#allocation4]
    $region21: #{tpu_custom_call.1} parent=1 // pred_fallthru
      _
    // Predicated region
    $region22: #{tpu_custom_call.1} parent=1 // pred_check
      _
    $region23: #{tpu_custom_call.1} parent=1 // pred_check_branch
      %57 = sbr.rel (0) target = $region25
    $region24: #{tpu_custom_call.1} parent=1 // pred_region
      %58 = dma.done [#allocation4], 64
    $region25: #{tpu_custom_call.1} parent=1 // pred_fallthru
      _
    %59 = vsyncpa [#allocation3], 1
    %60 = vsyncpa [#allocation6], 1
    %61 = vsyncpa [#allocation4], 1

</llo_original>
